<compile_context>
chip_gen: v5e
topology: v5e:2x2
jax: 0.10.0
libtpu: 0.0.40
codegen_flags: <defaults>
</compile_context>

<pallas_src>
import jax
import jax.numpy as jnp
from jax.experimental import pallas as pl
from jax.experimental.pallas import tpu as pltpu


def _round_up(x, m):
    return ((x + m - 1) // m) * m


def fuse_table_kernel(feat_ref, w_ref, b_ref, fused_ref):
    # feat_ref  : VMEM f32 [V, D]
    # w_ref     : VMEM f32 [D, O_pad]   (Linear weight, transposed + lane-padded)
    # b_ref     : VMEM f32 [1, O_pad]
    # fused_ref : VMEM f32 [V, O_pad]   = table @ W + b   (one shot, amortized)
    fused_ref[...] = (
        jnp.dot(feat_ref[...], w_ref[...], preferred_element_type=jnp.float32)
        + b_ref[...]
    )


def gather_relu_kernel(nodes_ref, fused_ref, out_ref):
    # nodes_ref : VMEM i32 [TN, 1]      (node ids for this row tile)
    # fused_ref : VMEM f32 [V, O_pad]   (resident, single-buffered)
    # out_ref   : VMEM f32 [TN, O_pad]
    tn = out_ref.shape[0]
    v = fused_ref.shape[0]

    # One-hot MXU gather: onehot[i, j] = (j == nodes[i]).  Exactly one 1.0 per
    # row makes the matmul an exact f32 row selection of the fused table.
    col_ids = jax.lax.broadcasted_iota(jnp.int32, (tn, v), 1)
    onehot = (col_ids == nodes_ref[...]).astype(jnp.float32)           # (TN, V)

    y = jnp.dot(onehot, fused_ref[...], preferred_element_type=jnp.float32)
    out_ref[...] = jnp.maximum(y, 0.0)


def mlp_forward(nodes, feat_table, w, b, *, tile_n=256):
    """relu(feat_table[nodes] @ w + b) via Pallas (fused table + one-hot gather)."""
    nodes = jnp.asarray(nodes)
    n = int(nodes.shape[0])
    v, d = feat_table.shape
    o = w.shape[1]

    # ---- lane-dense padding of the output dimension -------------------------
    o_pad = _round_up(o, 128)
    w_p = jnp.pad(w, ((0, 0), (0, o_pad - o)))
    b_p = jnp.pad(b, ((0, 0), (0, o_pad - o)))

    # ---- one-shot fused table: fused = table @ W + b  (V, O_pad) ------------
    fused = pl.pallas_call(
        fuse_table_kernel,
        out_shape=jax.ShapeDtypeStruct((v, o_pad), jnp.float32),
    )(feat_table, w_p, b_p)

    # ---- balanced row tiling -------------------------------------------------
    # PyTorch LongTensor ids -> int32, clamped into table range
    # (nn.Embedding would raise on OOB ids; clamping keeps the kernel safe).
    ids = jnp.clip(nodes.astype(jnp.int32), 0, v - 1)
    n8 = _round_up(max(n, 1), 8)
    g = pl.cdiv(n8, tile_n)                 # number of row tiles
    tn = _round_up(pl.cdiv(n8, g), 8)       # balanced tile, multiple of 8
    n_pad = g * tn                          # never rounds up by a whole tile
    # TODO(synk): on v7x (2 TensorCores) force g >= 2 for 16 <= n8 <= tile_n so
    # both cores get a tile; kept single-tile here to avoid shrinking tiles on
    # single-core v5e/v6e.
    ids = jnp.pad(ids, (0, n_pad - n))[:, None]                        # (n_pad, 1)

    # ---- explicit VMEM budget (v5e default scoped limit is only 16 MiB) -----
    est = (
        v * o_pad * 4                 # resident fused table (single buffer)
        + 2 * tn * (o_pad + 1) * 4    # double-buffered output + id tiles
        + 3 * tn * v * 4              # iota / onehot / matmul staging
    )
    vmem_limit = int(min(max(2 * est, 8 << 20), 48 << 20))

    out = pl.pallas_call(
        gather_relu_kernel,
        out_shape=jax.ShapeDtypeStruct((n_pad, o_pad), jnp.float32),
        grid=(g,),
        in_specs=[
            pl.BlockSpec((tn, 1), lambda i: (i, 0)),              # node-id tile
            pl.BlockSpec(memory_space=pltpu.MemorySpace.VMEM),    # fused table,
                                                                  # resident, 1x-buffered
        ],
        out_specs=pl.BlockSpec((tn, o_pad), lambda i: (i, 0)),
        compiler_params=pltpu.CompilerParams(
            dimension_semantics=("parallel",),
            vmem_limit_bytes=vmem_limit,
        ),
    )(ids, fused)
    return out[:n, :o]


if __name__ == "__main__":
    # Small, deterministic problem sizes implied by the module:
    num_total_nodes = 64   # embedding-table rows ("features" lookup)
    input_dim = 32         # MLP_.input_dim
    output_dim = 16        # MLP_.output_dim
    batch_n = 8            # number of node ids in `nodes`

    key = jax.random.PRNGKey(0)
    k_feat, k_w, k_b, k_nodes = jax.random.split(key, 4)

    # nn.Embedding default init ~ N(0, 1)
    feat_table = jax.random.normal(k_feat, (num_total_nodes, input_dim),
                                   dtype=jnp.float32)
    # nn.Linear default init ~ U(-1/sqrt(in_dim), 1/sqrt(in_dim))
    bound = 1.0 / (input_dim ** 0.5)
    w_torch = jax.random.uniform(k_w, (output_dim, input_dim),
                                 minval=-bound, maxval=bound,
                                 dtype=jnp.float32)
    b = jax.random.uniform(k_b, (1, output_dim),
                           minval=-bound, maxval=bound, dtype=jnp.float32)
    w = w_torch.T  # store as [input_dim, output_dim] for x @ W

    nodes = jax.random.randint(k_nodes, (batch_n,), 0, num_total_nodes,
                               dtype=jnp.int32)

    out = mlp_forward(nodes, feat_table, w, b)
    out = jax.block_until_ready(out)

    # Pure-JAX reference for correctness.
    ref = jnp.maximum(feat_table[nodes] @ w + b, 0.0)
    assert out.shape == (batch_n, output_dim)
    assert jnp.allclose(out, ref, atol=1e-5, rtol=1e-5)

    print("KERNEL_OK")
</pallas_src>

<mosaic_0001>
module attributes {stable_mosaic.version = 11 : i64} {
  func.func @fuse_table_kernel(%arg0: memref<64x32xf32, #tpu.memory_space<vmem>>, %arg1: memref<32x128xf32, #tpu.memory_space<vmem>>, %arg2: memref<1x128xf32, #tpu.memory_space<vmem>>, %arg3: memref<64x128xf32, #tpu.memory_space<vmem>>) attributes {dimension_semantics = [], scalar_prefetch = 0 : i64, scratch_operands = 0 : i64, tpu.core_type = #tpu.core_type<tc>} {
    %c0 = arith.constant 0 : index
    %c0_0 = arith.constant 0 : index
    %0 = vector.load %arg0[%c0, %c0_0] : memref<64x32xf32, #tpu.memory_space<vmem>>, vector<64x32xf32>
    %c0_1 = arith.constant 0 : index
    %c0_2 = arith.constant 0 : index
    %1 = vector.load %arg1[%c0_1, %c0_2] : memref<32x128xf32, #tpu.memory_space<vmem>>, vector<32x128xf32>
    %cst = arith.constant dense<0.000000e+00> : vector<64x128xf32>
    %2 = tpu.matmul %0, %1, %cst {dimension_numbers = #tpu.dot_dimension_numbers<[1], [0], [0], [1], [0, 0, 1, 1], [], []>} : vector<64x32xf32>, vector<32x128xf32>, vector<64x128xf32> -> vector<64x128xf32>
    %c0_3 = arith.constant 0 : index
    %c0_4 = arith.constant 0 : index
    %3 = vector.load %arg2[%c0_3, %c0_4] : memref<1x128xf32, #tpu.memory_space<vmem>>, vector<1x128xf32>
    %4 = vector.broadcast %3 : vector<1x128xf32> to vector<64x128xf32>
    %5 = arith.addf %2, %4 : vector<64x128xf32>
    %c0_5 = arith.constant 0 : index
    %c0_6 = arith.constant 0 : index
    %6 = vector.load %arg3[%c0_5, %c0_6] : memref<64x128xf32, #tpu.memory_space<vmem>>, vector<64x128xf32>
    tpu.vector_store %arg3[%c0_5, %c0_6], %5 {strides = array<i32>} : memref<64x128xf32, #tpu.memory_space<vmem>>, vector<64x128xf32>,
    return
  }
}

</mosaic_0001>

<llo_original>
// kernel: tpu_custom_call.1
$region0: #{tpu_custom_call.1}
  #allocation0 [shape = 'u32[]', space=smem, size = 0x4, offset = 0x4, fixed_abs, tag = 'smem constant byte address 0x4 - core index']
  #allocation1 [shape = 'u32[72,128]{1,0:T(1,128)}', space=vmem, size = 0x9000, scoped, tag = 'internal scratch']
  %s0 = inlined_call_operand.vmem [shape: f32[64,32], index: 0, kind: input, shape index: {}]
  %s1 = inlined_call_operand.vmem [shape: f32[32,128], index: 1, kind: input, shape index: {}]
  %s2 = inlined_call_operand.vmem [shape: f32[1,128], index: 2, kind: input, shape index: {}]
  %s3 = inlined_call_operand.hbm [shape: f32[64,128], index: 3, kind: output, shape index: {}]
  %s4 = sld [smem:[#allocation0]]
  $region22: #{tpu_custom_call.1} parent=0
    _
  %s6 = ssub.s32 1, %s4
  %s7 = scalar_select 0, %s6, %s4
  $region1: #{tpu_custom_call.1} parent=0
    #allocation2 [shape = 'u8[32768]{0}', space=vmem, size = 0x8000, scoped, tag = 'output window, operand 0, single buffered']
    #allocation3 [shape = 's32[1]{0}', space=sflag, size = 0x4, scoped, tag = 'scoped memory for tpu_custom_call.1']
    %8 = vsyncpa [#allocation3], 0
    // Predicated region
    $region2: #{tpu_custom_call.1} parent=1 // pred_check
      _
    $region3: #{tpu_custom_call.1} parent=1 // pred_check_branch
      %10 = sbr.rel (0) target = $region5
    $region4: #{tpu_custom_call.1} parent=1 // pred_region
      _
    $region5: #{tpu_custom_call.1} parent=1 // pred_fallthru
      _
    // Predicated region
    $region6: #{tpu_custom_call.1} parent=1 // pred_check
      _
    $region7: #{tpu_custom_call.1} parent=1 // pred_check_branch
      %12 = sbr.rel (0) target = $region9
    $region8: #{tpu_custom_call.1} parent=1 // pred_region
      _
    $region9: #{tpu_custom_call.1} parent=1 // pred_fallthru
      _
    // Predicated region
    $region10: #{tpu_custom_call.1} parent=1 // pred_check
      _
    $region11: #{tpu_custom_call.1} parent=1 // pred_check_branch
      %14 = sbr.rel (0) target = $region13
    $region12: #{tpu_custom_call.1} parent=1 // pred_region
      _
    $region13: #{tpu_custom_call.1} parent=1 // pred_fallthru
      _
    %v15 = vld [vmem:[%s0] sm:$0xff]
    %v16 = vld [vmem:[%s0 + $0x8] sm:$0xff]
    %v17 = vld [vmem:[%s0 + $0x10] sm:$0xff]
    %v18 = vld [vmem:[%s0 + $0x18] sm:$0xff]
    %v19 = vld [vmem:[%s0 + $0x20] sm:$0xff]
    %v20 = vld [vmem:[%s0 + $0x28] sm:$0xff]
    %v21 = vld [vmem:[%s0 + $0x30] sm:$0xff]
    %v22 = vld [vmem:[%s0 + $0x38] sm:$0xff]
    %v23 = vld [vmem:[%s1] sm:$0xff]
    %v24 = vld [vmem:[%s1 + $0x8] sm:$0xff]
    %v25 = vld [vmem:[%s1 + $0x10] sm:$0xff]
    %v26 = vld [vmem:[%s1 + $0x18] sm:$0xff]
    %v27 = vld [vmem:[%s2] sm:$0x1]
    %v29 = vperm.slane %v27, 0
    %vm31 = vcmask 261120
    %v33 = vsel %vm31, %v15, 0
    %v36 = vsel %vm31, %v16, 0
    %v39 = vsel %vm31, %v17, 0
    %v42 = vsel %vm31, %v18, 0
    %v45 = vsel %vm31, %v19, 0
    %v48 = vsel %vm31, %v20, 0
    %v51 = vsel %vm31, %v21, 0
    %v54 = vsel %vm31, %v22, 0
    %56 = vmatpush.msra.mxu0 0.0
    %57 = vmatpush.msra.mxu0 0.0
    %58 = vmatpush.msra.mxu0 0.0
    %59 = vmatpush.msra.mxu0 0.0
    %60 = vmatpush.msra.mxu0 0.0
    %61 = vmatpush.msra.mxu0 0.0
    %62 = vmatpush.msra.mxu0 0.0
    %63 = vmatpush.msra.mxu0 0.0
    %64 = vmatpush.msra.mxu0 0.0
    %65 = vmatpush.msra.mxu0 0.0
    %66 = vmatpush.msra.mxu0 0.0
    %67 = vmatpush.msra.mxu0 0.0
    %68 = vmatpush.msra.mxu0 %v26
    %69 = vmatpush.msra.mxu0 %v25
    %70 = vmatpush.msra.mxu0 %v24
    %71 = vmatpush.msra.mxu0 %v23
    %72 = vmatmul.f32.gmra.mxu0 %v33
    %v73 = vpop.f32.mrf.mxu0
    %v74 = vadd.f32 %v29, %v73
    %75 = vmatmul.f32.gmra.mxu0 %v36
    %v76 = vpop.f32.mrf.mxu0
    %v77 = vadd.f32 %v29, %v76
    %78 = vmatmul.f32.gmra.mxu0 %v39
    %v79 = vpop.f32.mrf.mxu0
    %v80 = vadd.f32 %v29, %v79
    %81 = vmatmul.f32.gmra.mxu0 %v42
    %v82 = vpop.f32.mrf.mxu0
    %v83 = vadd.f32 %v29, %v82
    %84 = vmatmul.f32.gmra.mxu0 %v45
    %v85 = vpop.f32.mrf.mxu0
    %v86 = vadd.f32 %v29, %v85
    %87 = vmatmul.f32.gmra.mxu0 %v48
    %v88 = vpop.f32.mrf.mxu0
    %v89 = vadd.f32 %v29, %v88
    %90 = vmatmul.f32.gmra.mxu0 %v51
    %v91 = vpop.f32.mrf.mxu0
    %v92 = vadd.f32 %v29, %v91
    %93 = vmatmul.f32.gmra.mxu0 %v54
    %v94 = vpop.f32.mrf.mxu0
    %v95 = vadd.f32 %v29, %v94
    %96 = vdwg.mxu0
    %97 = vst [vmem:[#allocation2] sm:$0xff] %v74
    %98 = vst [vmem:[#allocation2 + $0x8] sm:$0xff] %v77
    %99 = vst [vmem:[#allocation2 + $0x10] sm:$0xff] %v80
    %100 = vst [vmem:[#allocation2 + $0x18] sm:$0xff] %v83
    %101 = vst [vmem:[#allocation2 + $0x20] sm:$0xff] %v86
    %102 = vst [vmem:[#allocation2 + $0x28] sm:$0xff] %v89
    %103 = vst [vmem:[#allocation2 + $0x30] sm:$0xff] %v92
    %104 = vst [vmem:[#allocation2 + $0x38] sm:$0xff] %v95
    // Predicated region
    $region14: #{tpu_custom_call.1} parent=1 // pred_check
      _
    $region15: #{tpu_custom_call.1} parent=1 // pred_check_branch
      %106 = sbr.rel (0) target = $region17
    $region16: #{tpu_custom_call.1} parent=1 // pred_region
      %108 = vsyncadd [#allocation3], 0
      %s109 = sshll.u32 [#allocation2], 4
      %s110 = int_to_ptr.vmem [resolvable:$true] %s109
      %s111 = sshll.u32 %s3, 4
      %s112 = int_to_ptr.hbm [resolvable:$true] %s111
      %117 = dma.vmem_to_hbm [thread:$0]  %s110, 1024, %s112, [#allocation3], 128, 128, 8
    $region17: #{tpu_custom_call.1} parent=1 // pred_fallthru
      _
    // Predicated region
    $region18: #{tpu_custom_call.1} parent=1 // pred_check
      _
    $region19: #{tpu_custom_call.1} parent=1 // pred_check_branch
      %119 = sbr.rel (0) target = $region21
    $region20: #{tpu_custom_call.1} parent=1 // pred_region
      %121 = dma.done [#allocation3], 1024
    $region21: #{tpu_custom_call.1} parent=1 // pred_fallthru
      _
    %122 = vsyncpa [#allocation3], 1

</llo_original>
